<compile_context>
chip_gen: v5e
topology: v5e:2x2
jax: 0.10.0
libtpu: 0.0.40
codegen_flags: <defaults>
</compile_context>

<pallas_src>
import math

import jax
import jax.numpy as jnp
from jax.experimental import pallas as pl
from jax.experimental.pallas import tpu as pltpu


def _round_up(x, m):
    return ((x + m - 1) // m) * m


# ---------------------------------------------------------------------------
# Kernels
# ---------------------------------------------------------------------------
def _gcn_kernel_adj_first(adj_ref, feat_ref, w_ref, b_ref, out_ref):
    """out_tile = (adj_tile @ feature) @ W + bias   (used when in_f <= out_f)."""
    # [TM, N] @ [N, in_f] -> [TM, in_f]; bf16 operands, f32 MXU accumulation.
    tmp = jnp.dot(adj_ref[...], feat_ref[...], preferred_element_type=jnp.float32)
    # [TM, in_f] @ [in_f, out_pad] -> [TM, out_pad]; tiny matmul, keep f32.
    out = jnp.dot(tmp, w_ref[...], preferred_element_type=jnp.float32)
    # Bias added once per output tile (no inner reduction loop -> no rebroadcast).
    out_ref[...] = (out + b_ref[...]).astype(out_ref.dtype)


def _gcn_kernel_support_first(adj_ref, feat_ref, w_ref, b_ref, out_ref, support_ref):
    """out_tile = adj_tile @ (feature @ W) + bias   (used when out_f < in_f).

    `support` is computed once on the first grid step into VMEM scratch that
    stays resident across the sequential row-tile loop.
    """
    @pl.when(pl.program_id(0) == 0)
    def _():
        support = jnp.dot(
            feat_ref[...].astype(jnp.float32), w_ref[...],
            preferred_element_type=jnp.float32,
        )
        support_ref[...] = support.astype(support_ref.dtype)

    out = jnp.dot(adj_ref[...], support_ref[...], preferred_element_type=jnp.float32)
    out_ref[...] = (out + b_ref[...]).astype(out_ref.dtype)


# ---------------------------------------------------------------------------
# Wrapper
# ---------------------------------------------------------------------------
def graph_conv_layer(feature, adj, weight, bias=None, *,
                     compute_dtype=jnp.bfloat16, block_rows=None):
    """Pallas implementation of GraphConvLayer.forward.

    feature: [N, in_f], adj: [N, N], weight: [in_f, out_f], bias: [out_f] or None.
    Returns float32 [N, out_f].
    """
    n, in_f = feature.shape
    assert weight.shape[0] == in_f
    out_f = weight.shape[1]
    assert adj.shape == (n, n)

    # Lane-dense output: pad out_features to a multiple of 128, slice back later.
    out_pad = _round_up(out_f, 128)
    w_p = jnp.zeros((in_f, out_pad), jnp.float32).at[:, :out_f].set(
        weight.astype(jnp.float32))
    if bias is None:
        b_p = jnp.zeros((1, out_pad), jnp.float32)
    else:
        b_p = jnp.zeros((1, out_pad), jnp.float32).at[:, :out_f].set(
            jnp.asarray(bias).reshape(1, out_f).astype(jnp.float32))

    # Bandwidth-bound stream (adj) and feature in bf16; accumulation stays f32.
    adj_c = adj.astype(compute_dtype)
    feat_c = feature.astype(compute_dtype)
    stream_bytes = jnp.dtype(compute_dtype).itemsize

    adj_first = in_f <= out_f  # contract adj against the narrower operand

    # Row-tile size: bound per-step VMEM (double-buffered adj + output tiles plus
    # resident small operands / support scratch) to ~24 MiB -> fits default scoped
    # VMEM on v5e/v6e and leaves headroom on v7x's 64 MiB physical VMEM.
    if block_rows is None:
        resident = n * in_f * stream_bytes + in_f * out_pad * 4 + out_pad * 4
        if not adj_first:
            resident += n * out_pad * stream_bytes  # support scratch
        budget = 24 * 1024 * 1024
        tm = 512
        while tm > 8 and 2 * tm * (n * stream_bytes + out_pad * 4) + resident > budget:
            tm //= 2
        block_rows = tm
    if block_rows >= n:
        block_rows = n                      # full-dim block: always legal
    else:
        block_rows = max(8, (block_rows // 8) * 8)   # sublane (8) alignment

    grid = (pl.cdiv(n, block_rows),)

    adj_spec = pl.BlockSpec((block_rows, n), lambda i: (i, 0))
    feat_spec = pl.BlockSpec((n, in_f), lambda i: (0, 0))
    w_spec = pl.BlockSpec((in_f, out_pad), lambda i: (0, 0))
    b_spec = pl.BlockSpec((1, out_pad), lambda i: (0, 0))
    out_spec = pl.BlockSpec((block_rows, out_pad), lambda i: (i, 0))

    flops = 2 * n * n * min(in_f, out_f) + 2 * n * in_f * out_f
    bytes_accessed = (n * n * stream_bytes + n * in_f * stream_bytes
                      + in_f * out_pad * 4 + out_pad * 4 + n * out_pad * 4)
    cost = pl.CostEstimate(flops=flops, transcendentals=0,
                           bytes_accessed=bytes_accessed)

    if adj_first:
        kernel = _gcn_kernel_adj_first
        scratch_shapes = ()
        dim_sem = ("parallel",)      # independent row tiles -> megacore on v7x
    else:
        kernel = _gcn_kernel_support_first
        scratch_shapes = [pltpu.VMEM((n, out_pad), compute_dtype)]
        dim_sem = ("arbitrary",)     # scratch written at step 0, read afterwards

    out_padded = pl.pallas_call(
        kernel,
        out_shape=jax.ShapeDtypeStruct((n, out_pad), jnp.float32),
        grid=grid,
        in_specs=[adj_spec, feat_spec, w_spec, b_spec],
        out_specs=out_spec,
        scratch_shapes=scratch_shapes,
        compiler_params=pltpu.CompilerParams(dimension_semantics=dim_sem),
        cost_estimate=cost,
    )(adj_c, feat_c, w_p, b_p)

    return out_padded[:, :out_f]


# ---------------------------------------------------------------------------
# Parameter init matching the PyTorch module's __init__
# ---------------------------------------------------------------------------
def init_params(key, in_features, out_features):
    k_w, k_b = jax.random.split(key)
    # xavier_uniform_: U(-a, a), a = sqrt(6 / (fan_in + fan_out))
    a = math.sqrt(6.0 / (in_features + out_features))
    weight = jax.random.uniform(
        k_w, (in_features, out_features), jnp.float32, minval=-a, maxval=a)
    # bias: U(-stdv, stdv), stdv = 1 / sqrt(out_features)
    stdv = 1.0 / math.sqrt(out_features)
    bias = jax.random.uniform(
        k_b, (out_features,), jnp.float32, minval=-stdv, maxval=stdv)
    return weight, bias


if __name__ == "__main__":
    key = jax.random.PRNGKey(0)
    k_feat, k_adj, k_params = jax.random.split(key, 3)

    N = 16            # number of graph nodes
    IN_FEATURES = 8
    OUT_FEATURES = 32

    feature = jax.random.normal(k_feat, (N, IN_FEATURES), jnp.float32)
    adj_raw = jax.random.uniform(k_adj, (N, N), jnp.float32)
    adj = (adj_raw + adj_raw.T) / (2.0 * N)

    weight, bias = init_params(k_params, IN_FEATURES, OUT_FEATURES)

    # --- main (adj-first) path, bf16 stream + f32 accumulation -------------
    out = graph_conv_layer(feature, adj, weight, bias)
    out = jax.block_until_ready(out)
    ref = adj @ (feature @ weight) + bias
    assert out.shape == (N, OUT_FEATURES)
    assert jnp.allclose(out, ref, atol=1e-2, rtol=1e-2), "bf16 path mismatch"

    # --- f32 stream variant of the same path (tighter check) ---------------
    out_f32 = jax.block_until_ready(
        graph_conv_layer(feature, adj, weight, bias, compute_dtype=jnp.float32))
    assert jnp.allclose(out_f32, ref, atol=1e-2, rtol=1e-2), "f32 path mismatch"

    # --- support-first path (out_features < in_features) -------------------
    w2, b2 = init_params(k_params, OUT_FEATURES, IN_FEATURES)   # 32 -> 8
    feat2 = jax.random.normal(k_feat, (N, OUT_FEATURES), jnp.float32)
    out2 = jax.block_until_ready(
        graph_conv_layer(feat2, adj, w2, b2, compute_dtype=jnp.float32))
    ref2 = adj @ (feat2 @ w2) + b2
    assert out2.shape == (N, IN_FEATURES)
    assert jnp.allclose(out2, ref2, atol=1e-2, rtol=1e-2), "support path mismatch"

    print("KERNEL_OK")
</pallas_src>

<mosaic_0001>
module attributes {stable_mosaic.version = 11 : i64} {
  func.func @_gcn_kernel_adj_first(%arg0: i32, %arg1: memref<16x16xbf16, #tpu.memory_space<vmem>>, %arg2: memref<16x8xbf16, #tpu.memory_space<vmem>>, %arg3: memref<8x128xf32, #tpu.memory_space<vmem>>, %arg4: memref<1x128xf32, #tpu.memory_space<vmem>>, %arg5: memref<16x128xf32, #tpu.memory_space<vmem>>) attributes {dimension_semantics = [#tpu.dimension_semantics<parallel>], iteration_bounds = array<i64: 1>, scalar_prefetch = 0 : i64, scratch_operands = 0 : i64, tpu.core_type = #tpu.core_type<tc>, window_params = [{transform_indices = @transform_0, window_bounds = array<i64: 16, 16>}, {pipeline_mode = #tpu.pipeline_mode<synchronous>, transform_indices = @transform_1, window_bounds = array<i64: 16, 8>}, {pipeline_mode = #tpu.pipeline_mode<synchronous>, transform_indices = @transform_2, window_bounds = array<i64: 8, 128>}, {pipeline_mode = #tpu.pipeline_mode<synchronous>, transform_indices = @transform_3, window_bounds = array<i64: 1, 128>}, {transform_indices = @transform_4, window_bounds = array<i64: 16, 128>}]} {
    %c0 = arith.constant 0 : index
    %c0_0 = arith.constant 0 : index
    %0 = vector.load %arg1[%c0, %c0_0] : memref<16x16xbf16, #tpu.memory_space<vmem>>, vector<16x16xbf16>
    %c0_1 = arith.constant 0 : index
    %c0_2 = arith.constant 0 : index
    %1 = vector.load %arg2[%c0_1, %c0_2] : memref<16x8xbf16, #tpu.memory_space<vmem>>, vector<16x8xbf16>
    %cst = arith.constant dense<0.000000e+00> : vector<16x8xf32>
    %2 = tpu.matmul %0, %1, %cst {dimension_numbers = #tpu.dot_dimension_numbers<[1], [0], [0], [1], [0, 0, 1, 1], [], []>} : vector<16x16xbf16>, vector<16x8xbf16>, vector<16x8xf32> -> vector<16x8xf32>
    %c0_3 = arith.constant 0 : index
    %c0_4 = arith.constant 0 : index
    %3 = vector.load %arg3[%c0_3, %c0_4] : memref<8x128xf32, #tpu.memory_space<vmem>>, vector<8x128xf32>
    %cst_5 = arith.constant dense<0.000000e+00> : vector<16x128xf32>
    %4 = tpu.matmul %2, %3, %cst_5 {dimension_numbers = #tpu.dot_dimension_numbers<[1], [0], [0], [1], [0, 0, 1, 1], [], []>} : vector<16x8xf32>, vector<8x128xf32>, vector<16x128xf32> -> vector<16x128xf32>
    %c0_6 = arith.constant 0 : index
    %c0_7 = arith.constant 0 : index
    %5 = vector.load %arg4[%c0_6, %c0_7] : memref<1x128xf32, #tpu.memory_space<vmem>>, vector<1x128xf32>
    %6 = vector.broadcast %5 : vector<1x128xf32> to vector<16x128xf32>
    %7 = arith.addf %4, %6 : vector<16x128xf32>
    %c0_8 = arith.constant 0 : index
    %c0_9 = arith.constant 0 : index
    %8 = vector.load %arg5[%c0_8, %c0_9] : memref<16x128xf32, #tpu.memory_space<vmem>>, vector<16x128xf32>
    tpu.vector_store %arg5[%c0_8, %c0_9], %7 {strides = array<i32>} : memref<16x128xf32, #tpu.memory_space<vmem>>, vector<16x128xf32>,
    return
  }
  func.func @transform_0(%arg0: i32) -> (i32, i32) {
    %c0_i32 = arith.constant 0 : i32
    %c0_i32_0 = arith.constant 0 : i32
    return %arg0, %c0_i32 : i32, i32
  }
  func.func @transform_1(%arg0: i32) -> (i32, i32) {
    %c0_i32 = arith.constant 0 : i32
    %c0_i32_0 = arith.constant 0 : i32
    %c0_i32_1 = arith.constant 0 : i32
    return %c0_i32, %c0_i32_0 : i32, i32
  }
  func.func @transform_2(%arg0: i32) -> (i32, i32) {
    %c0_i32 = arith.constant 0 : i32
    %c0_i32_0 = arith.constant 0 : i32
    %c0_i32_1 = arith.constant 0 : i32
    return %c0_i32, %c0_i32_0 : i32, i32
  }
  func.func @transform_3(%arg0: i32) -> (i32, i32) {
    %c0_i32 = arith.constant 0 : i32
    %c0_i32_0 = arith.constant 0 : i32
    %c0_i32_1 = arith.constant 0 : i32
    return %c0_i32, %c0_i32_0 : i32, i32
  }
  func.func @transform_4(%arg0: i32) -> (i32, i32) {
    %c0_i32 = arith.constant 0 : i32
    %c0_i32_0 = arith.constant 0 : i32
    return %arg0, %c0_i32 : i32, i32
  }
}

</mosaic_0001>

<llo_original>
// kernel: tpu_custom_call.1
$region0: #{tpu_custom_call.1}
  #allocation0 [shape = 'u32[]', space=smem, size = 0x4, offset = 0x4, fixed_abs, tag = 'smem constant byte address 0x4 - core index']
  #allocation1 [shape = 'u32[72,128]{1,0:T(1,128)}', space=vmem, size = 0x9000, scoped, tag = 'internal scratch']
  %s0 = inlined_call_operand.vmem [shape: bf16[16,16], index: 0, kind: input, shape index: {}]
  %s1 = inlined_call_operand.vmem [shape: bf16[16,8], index: 1, kind: input, shape index: {}]
  %s2 = inlined_call_operand.hbm [shape: f32[8,128], index: 2, kind: input, shape index: {}]
  %s3 = inlined_call_operand.vmem [shape: f32[1,128], index: 3, kind: input, shape index: {}]
  %s4 = inlined_call_operand.hbm [shape: f32[16,128], index: 4, kind: output, shape index: {}]
  %s5 = sld [smem:[#allocation0]]
  $region30: #{tpu_custom_call.1} parent=0
    _
  %s7 = ssub.s32 1, %s5
  %s8 = scalar_select 0, %s7, %s5
  $region1: #{tpu_custom_call.1} parent=0
    #allocation2 [shape = 'u8[4096]{0}', space=vmem, size = 0x1000, scoped, tag = 'input window, operand 2, single buffered']
    #allocation3 [shape = 's32[1]{0}', space=sflag, size = 0x4, scoped, tag = 'scoped memory for tpu_custom_call.1']
    #allocation4 [shape = 's32[1]{0}', space=sflag, size = 0x4, scoped, tag = 'scoped memory for tpu_custom_call.1']
    #allocation5 [shape = 'u8[8192]{0}', space=vmem, size = 0x2000, scoped, tag = 'output window, operand 0, single buffered']
    %9 = vsyncpa [#allocation3], 0
    %10 = vsyncpa [#allocation4], 0
    // Predicated region
    $region2: #{tpu_custom_call.1} parent=1 // pred_check
      _
    $region3: #{tpu_custom_call.1} parent=1 // pred_check_branch
      %12 = sbr.rel (0) target = $region5
    $region4: #{tpu_custom_call.1} parent=1 // pred_region
      _
    $region5: #{tpu_custom_call.1} parent=1 // pred_fallthru
      _
    // Predicated region
    $region6: #{tpu_custom_call.1} parent=1 // pred_check
      _
    $region7: #{tpu_custom_call.1} parent=1 // pred_check_branch
      %14 = sbr.rel (0) target = $region9
    $region8: #{tpu_custom_call.1} parent=1 // pred_region
      _
    $region9: #{tpu_custom_call.1} parent=1 // pred_fallthru
      _
    // Predicated region
    $region10: #{tpu_custom_call.1} parent=1 // pred_check
      _
    $region11: #{tpu_custom_call.1} parent=1 // pred_check_branch
      %16 = sbr.rel (0) target = $region13
    $region12: #{tpu_custom_call.1} parent=1 // pred_region
      %18 = vsyncadd [#allocation3], 0
      %s20 = sshll.u32 %s2, 4
      %s21 = int_to_ptr.hbm [resolvable:$true] %s20
      %s22 = sshll.u32 [#allocation2], 4
      %s23 = int_to_ptr.vmem [resolvable:$true] %s22
      %25 = dma.hbm_to_vmem [thread:$0]  %s21, 128, %s23, [#allocation3]
    $region13: #{tpu_custom_call.1} parent=1 // pred_fallthru
      _
    // Predicated region
    $region14: #{tpu_custom_call.1} parent=1 // pred_check
      _
    $region15: #{tpu_custom_call.1} parent=1 // pred_check_branch
      %27 = sbr.rel (0) target = $region17
    $region16: #{tpu_custom_call.1} parent=1 // pred_region
      _
    $region17: #{tpu_custom_call.1} parent=1 // pred_fallthru
      _
    // Predicated region
    $region18: #{tpu_custom_call.1} parent=1 // pred_check
      _
    $region19: #{tpu_custom_call.1} parent=1 // pred_check_branch
      %29 = sbr.rel (0) target = $region21
    $region20: #{tpu_custom_call.1} parent=1 // pred_region
      %31 = dma.done [#allocation3], 128
    $region21: #{tpu_custom_call.1} parent=1 // pred_fallthru
      _
    %v33 = vld [vmem:[%s0] sm:$0xf]
    %v34 = vld [vmem:[%s0 + $0x4] sm:$0xf]
    %v35 = vld [vmem:[%s1] sm:$0xf]
    %v36 = vld [vmem:[%s1 + $0x4] sm:$0xf]
    %v39 = vunpack.c.l.b16 %v33
    %v40 = vunpack.c.l.b16 %v34
    %v41 = vpack.c.b16 %v40, %v39
    %v44 = vunpack.c.l.b16 %v35
    %v45 = vunpack.c.l.b16 %v36
    %v46 = vpack.c.b16 %v45, %v44
    %vm48 = vcmask 130048
    %v50 = vsel %vm48, %v41, 0
    %52 = vmatpush.bf16.msra.mxu0 0
    %53 = vmatpush.bf16.msra.mxu0 0
    %54 = vmatpush.bf16.msra.mxu0 0
    %55 = vmatpush.bf16.msra.mxu0 0
    %56 = vmatpush.bf16.msra.mxu0 0
    %57 = vmatpush.bf16.msra.mxu0 0
    %58 = vmatpush.bf16.msra.mxu0 0
    %59 = vmatpush.bf16.msra.mxu0 %v46
    %60 = vmatmul.bf16.gmra.mxu0 %v50
    %v61 = vpop.f32.mrf.mxu0
    %v62 = vadd.f32 0.0, %v61
    %v63 = vpop.f32.mrf.mxu0
    %v64 = vadd.f32 0.0, %v63
    %65 = vdwg.mxu0
    %v66 = vld [vmem:[#allocation2] sm:$0xff]
    %v67 = vld [vmem:[%s3] sm:$0x1]
    %v69 = vperm.slane %v67, 0
    %vm71 = vcmask 64512
    %v73 = vsel %vm71, %v62, 0
    %v76 = vsel %vm71, %v64, 0
    %78 = vmatpush.msra.mxu0 0.0
    %79 = vmatpush.msra.mxu0 0.0
    %80 = vmatpush.msra.mxu0 0.0
    %81 = vmatpush.msra.mxu0 0.0
    %82 = vmatpush.msra.mxu0 0.0
    %83 = vmatpush.msra.mxu0 0.0
    %84 = vmatpush.msra.mxu0 0.0
    %85 = vmatpush.msra.mxu0 0.0
    %86 = vmatpush.msra.mxu0 0.0
    %87 = vmatpush.msra.mxu0 0.0
    %88 = vmatpush.msra.mxu0 0.0
    %89 = vmatpush.msra.mxu0 0.0
    %90 = vmatpush.msra.mxu0 0.0
    %91 = vmatpush.msra.mxu0 0.0
    %92 = vmatpush.msra.mxu0 0.0
    %93 = vmatpush.msra.mxu0 %v66
    %94 = vmatmul.f32.gmra.mxu0 %v73
    %v95 = vpop.f32.mrf.mxu0
    %v96 = vadd.f32 %v69, %v95
    %97 = vmatmul.f32.gmra.mxu0 %v76
    %v98 = vpop.f32.mrf.mxu0
    %v99 = vadd.f32 %v69, %v98
    %100 = vdwg.mxu0
    %101 = vst [vmem:[#allocation5] sm:$0xff] %v96
    %102 = vst [vmem:[#allocation5 + $0x8] sm:$0xff] %v99
    // Predicated region
    $region22: #{tpu_custom_call.1} parent=1 // pred_check
      _
    $region23: #{tpu_custom_call.1} parent=1 // pred_check_branch
      %104 = sbr.rel (0) target = $region25
    $region24: #{tpu_custom_call.1} parent=1 // pred_region
      %106 = vsyncadd [#allocation4], 0
      %s107 = sshll.u32 [#allocation5], 4
      %s108 = int_to_ptr.vmem [resolvable:$true] %s107
      %s109 = sshll.u32 %s4, 4
      %s110 = int_to_ptr.hbm [resolvable:$true] %s109
      %115 = dma.vmem_to_hbm [thread:$0]  %s108, 256, %s110, [#allocation4], 128, 128, 8
    $region25: #{tpu_custom_call.1} parent=1 // pred_fallthru
      _
    // Predicated region
    $region26: #{tpu_custom_call.1} parent=1 // pred_check
      _
    $region27: #{tpu_custom_call.1} parent=1 // pred_check_branch
      %117 = sbr.rel (0) target = $region29
    $region28: #{tpu_custom_call.1} parent=1 // pred_region
      %119 = dma.done [#allocation4], 256
    $region29: #{tpu_custom_call.1} parent=1 // pred_fallthru
      _
    %120 = vsyncpa [#allocation3], 1
    %121 = vsyncpa [#allocation4], 1

</llo_original>
